<compile_context>
chip_gen: v7x
topology: tpu7x:2x2x1
jax: 0.10.0
libtpu: 0.0.40
codegen_flags: <defaults>
</compile_context>

<pallas_src>
import functools

import jax
import jax.numpy as jnp
from jax import lax
from jax.experimental import pallas as pl
from jax.experimental.pallas import tpu as pltpu


def lstm_recurrence_kernel(xproj_ref, whh_ref, h_out_ref, h_ref, c_ref, *,
                           hidden, batch, t_chunk):
    """One grid step = `t_chunk` LSTM timesteps.

    xproj_ref : (t_chunk*B, 4H) f32  streamed; x @ W_ih^T + (b_ih+b_hh), gate cols [i,f,o,g]
    whh_ref   : (H, 4H)        bf16  resident recurrent weight (pre-cast host-side)
    h_out_ref : (B, H)         f32   final hidden state (written on the last chunk only)
    h_ref/c_ref: (B, H)        f32   VMEM scratch carries persisting across grid steps
    """
    H, B = hidden, batch

    # First chunk: zero-init the recurrent state.
    @pl.when(pl.program_id(0) == 0)
    def _init():
        h_ref[...] = jnp.zeros_like(h_ref)
        c_ref[...] = jnp.zeros_like(c_ref)

    whh = whh_ref[...]            # (H, 4H) bf16, held across the whole chunk
    # TODO(synk): at production H, pin W_hh in the MXU staging registers for the chunk via
    # pltpu.matmul_push_rhs / matmul_acc_lhs / matmul_pop to drop the per-step RHS load.

    def step(t, carry):
        h, c = carry
        row = pl.multiple_of(t * B, B)                    # sublane-aligned (B multiple of 8)
        xp = xproj_ref[pl.ds(row, B), :]                  # (B, 4H) f32, bias already folded in
        gates = xp + jnp.dot(h.astype(jnp.bfloat16), whh,
                             preferred_element_type=jnp.float32)   # (B, 4H) f32
        # Gate order is [i, f, o, g]: one wide tanh-based sigmoid over 3H contiguous lanes,
        # one tanh over the remaining H lanes. All elementwise math stays in f32 (v5e-safe).
        sig = 0.5 * jnp.tanh(0.5 * gates[:, :3 * H]) + 0.5
        i = sig[:, 0 * H:1 * H]
        f = sig[:, 1 * H:2 * H]
        o = sig[:, 2 * H:3 * H]
        g = jnp.tanh(gates[:, 3 * H:4 * H])
        c = f * c + i * g
        h = o * jnp.tanh(c)
        return h, c

    # Partially-unrolled fori_loop: bounded vreg live ranges even for large t_chunk, while the
    # unroll factor still gives LLO scheduling visibility across adjacent timesteps.
    h, c = lax.fori_loop(0, t_chunk, step, (h_ref[...], c_ref[...]),
                         unroll=min(8, t_chunk))
    h_ref[...] = h
    c_ref[...] = c

    # Last chunk: emit the final hidden state (lane-dense (B, H) writeback).
    @pl.when(pl.program_id(0) == pl.num_programs(0) - 1)
    def _final():
        h_out_ref[...] = h


def btc_lstm_forward(x, params, *, t_chunk=32):
    """x: (B, T, D) float32 (batch_first, PyTorch convention). Returns (B, 1) f32."""
    B, T, D = x.shape
    H = params["w_hh"].shape[1]                 # w_hh stored as (4H, H)
    t_chunk = min(t_chunk, T)
    assert T % t_chunk == 0, "t_chunk must divide T"

    # Permute gate columns from PyTorch [i,f,g,o] -> [i,f,o,g] (contiguous sigmoid span).
    def reorder(w):  # (..., 4H)
        return jnp.concatenate(
            [w[..., :2 * H], w[..., 3 * H:4 * H], w[..., 2 * H:3 * H]], axis=-1)

    # Input projection hoisted fully out of the kernel: at D=4 a streamed (rows, D) block is
    # ~3% lane-utilized and the MXU would run at K=4; one XLA matmul here and the kernel
    # streams lane-dense (rows, 4H) blocks instead. Extra HBM bytes are irrelevant (the
    # kernel is latency-bound, not bandwidth-bound, at these shapes).
    # TODO(synk): for production D >= 128, move this projection back inside the kernel
    # (per-chunk (t_chunk*B, D) x (D, 4H) matmul) to avoid 4H/D x more HBM traffic.
    wih_t = reorder(params["w_ih"].T)                                    # (D, 4H)
    bias = reorder((params["b_ih"] + params["b_hh"]).reshape(1, 4 * H))  # (1, 4H)
    x_tm = jnp.transpose(x, (1, 0, 2)).reshape(T * B, D)                 # time-major rows
    xproj = (x_tm @ wih_t + bias).astype(jnp.float32)                    # (T*B, 4H) f32

    # Recurrent weight pre-cast to bf16 host-side (f32 accumulation in the kernel matmul).
    whh_bf16 = reorder(params["w_hh"].T).astype(jnp.bfloat16)            # (H, 4H)

    kernel = functools.partial(lstm_recurrence_kernel,
                               hidden=H, batch=B, t_chunk=t_chunk)
    n_chunks = T // t_chunk
    rows = t_chunk * B

    grid_spec = pltpu.PrefetchScalarGridSpec(
        num_scalar_prefetch=0,
        grid=(n_chunks,),
        in_specs=[
            # Streamed xproj chunk (auto double-buffered DMA overlapped with the recurrence).
            pl.BlockSpec((rows, 4 * H), lambda t: (t, 0)),
            # Resident recurrent weight. At production H, add pipeline_mode=pl.Buffered(1)
            # here to drop the redundant second buffer (matters on v7x's 64 MiB VMEM).
            pl.BlockSpec((H, 4 * H), lambda t: (0, 0)),
        ],
        out_specs=pl.BlockSpec((B, H), lambda t: (0, 0)),  # resident; written on last chunk
        scratch_shapes=[
            pltpu.VMEM((B, H), jnp.float32),               # h carry
            pltpu.VMEM((B, H), jnp.float32),               # c carry
        ],
    )

    h_last = pl.pallas_call(
        kernel,
        out_shape=jax.ShapeDtypeStruct((B, H), jnp.float32),
        grid_spec=grid_spec,
        compiler_params=pltpu.CompilerParams(
            # Serial recurrence over time chunks. For v7x (2 TCs) at real batch sizes, add a
            # leading 'parallel' batch-tile axis and gate the h/c init on the time program_id.
            dimension_semantics=("arbitrary",),
            vmem_limit_bytes=32 * 1024 * 1024,
        ),
    )(xproj, whh_bf16)

    # Classifier head outside the kernel: lane-dense h writeback instead of a 1-lane masked
    # store plus a throwaway single-use MXU op and two resident VMEM blocks.
    return jax.nn.sigmoid(h_last @ params["fc_w"].T + params["fc_b"])


def init_params(key, input_size, hidden_size):
    """Deterministic init mirroring PyTorch's uniform(-1/sqrt(H), 1/sqrt(H))."""
    k = 1.0 / jnp.sqrt(jnp.float32(hidden_size))
    keys = jax.random.split(key, 6)
    u = lambda kk, shape: jax.random.uniform(kk, shape, jnp.float32, -k, k)
    return {
        "w_ih": u(keys[0], (4 * hidden_size, input_size)),
        "w_hh": u(keys[1], (4 * hidden_size, hidden_size)),
        "b_ih": u(keys[2], (4 * hidden_size,)),
        "b_hh": u(keys[3], (4 * hidden_size,)),
        "fc_w": u(keys[4], (1, hidden_size)),
        "fc_b": u(keys[5], (1,)),
    }


def reference_forward(x, params):
    """Pure-JAX f32 reference of the PyTorch forward (PyTorch [i,f,g,o] gate order)."""
    B, T, D = x.shape
    H = params["w_hh"].shape[1]
    wih_t, whh_t = params["w_ih"].T, params["w_hh"].T
    bias = params["b_ih"] + params["b_hh"]
    h = jnp.zeros((B, H), jnp.float32)
    c = jnp.zeros((B, H), jnp.float32)
    for t in range(T):
        gates = x[:, t, :] @ wih_t + h @ whh_t + bias
        i = jax.nn.sigmoid(gates[:, 0 * H:1 * H])
        f = jax.nn.sigmoid(gates[:, 1 * H:2 * H])
        g = jnp.tanh(gates[:, 2 * H:3 * H])
        o = jax.nn.sigmoid(gates[:, 3 * H:4 * H])
        c = f * c + i * g
        h = o * jnp.tanh(c)
    return jax.nn.sigmoid(h @ params["fc_w"].T + params["fc_b"])


if __name__ == "__main__":
    B, T, D, H = 8, 8, 4, 32  # small shapes consistent with the module's forward
    key = jax.random.PRNGKey(0)
    kx, kp = jax.random.split(key)
    x = jax.random.normal(kx, (B, T, D), jnp.float32)
    params = init_params(kp, input_size=D, hidden_size=H)

    # t_chunk=4 -> 2 grid steps, exercising the cross-chunk h/c scratch carry path.
    out = btc_lstm_forward(x, params, t_chunk=4)
    out = jax.block_until_ready(out)

    ref = reference_forward(x, params)
    assert out.shape == (B, 1)
    # bf16 h@W_hh operand (f32 accumulation) -> tolerance loosened vs the f32 reference.
    assert jnp.allclose(out, ref, atol=2e-2, rtol=2e-2), (out, ref)
    print("KERNEL_OK")
</pallas_src>

<mosaic_0001>
module attributes {stable_mosaic.version = 11 : i64} {
  func.func @lstm_recurrence_kernel(%arg0: i32, %arg1: memref<32x128xf32, #tpu.memory_space<vmem>>, %arg2: memref<32x128xbf16, #tpu.memory_space<vmem>>, %arg3: memref<8x32xf32, #tpu.memory_space<vmem>>, %arg4: memref<8x32xf32, #tpu.memory_space<vmem>>, %arg5: memref<8x32xf32, #tpu.memory_space<vmem>>) attributes {dimension_semantics = [#tpu.dimension_semantics<arbitrary>], iteration_bounds = array<i64: 2>, scalar_prefetch = 0 : i64, scratch_operands = 2 : i64, tpu.core_type = #tpu.core_type<tc>, window_params = [{transform_indices = @transform_0, window_bounds = array<i64: 32, 128>}, {pipeline_mode = #tpu.pipeline_mode<synchronous>, transform_indices = @transform_1, window_bounds = array<i64: 32, 128>}, {pipeline_mode = #tpu.pipeline_mode<synchronous>, transform_indices = @transform_2, window_bounds = array<i64: 8, 32>}]} {
    %c0_i32 = arith.constant 0 : i32
    %0 = arith.cmpi eq, %arg0, %c0_i32 : i32
    %1 = arith.extui %0 : i1 to i32
    %c0_i32_0 = arith.constant 0 : i32
    %2 = arith.cmpi ne, %1, %c0_i32_0 : i32
    scf.if %2 {
      %cst_35 = arith.constant 0.000000e+00 : f32
      %111 = vector.broadcast %cst_35 : f32 to vector<8x32xf32>
      %c0_36 = arith.constant 0 : index
      %c0_37 = arith.constant 0 : index
      %112 = vector.load %arg4[%c0_36, %c0_37] : memref<8x32xf32, #tpu.memory_space<vmem>>, vector<8x32xf32>
      tpu.vector_store %arg4[%c0_36, %c0_37], %111 {strides = array<i32>} : memref<8x32xf32, #tpu.memory_space<vmem>>, vector<8x32xf32>,
      %cst_38 = arith.constant 0.000000e+00 : f32
      %113 = vector.broadcast %cst_38 : f32 to vector<8x32xf32>
      %c0_39 = arith.constant 0 : index
      %c0_40 = arith.constant 0 : index
      %114 = vector.load %arg5[%c0_39, %c0_40] : memref<8x32xf32, #tpu.memory_space<vmem>>, vector<8x32xf32>
      tpu.vector_store %arg5[%c0_39, %c0_40], %113 {strides = array<i32>} : memref<8x32xf32, #tpu.memory_space<vmem>>, vector<8x32xf32>,
    } else {
    }
    %c0 = arith.constant 0 : index
    %c0_1 = arith.constant 0 : index
    %3 = vector.load %arg2[%c0, %c0_1] : memref<32x128xbf16, #tpu.memory_space<vmem>>, vector<32x128xbf16>
    %c0_2 = arith.constant 0 : index
    %c0_3 = arith.constant 0 : index
    %4 = vector.load %arg4[%c0_2, %c0_3] : memref<8x32xf32, #tpu.memory_space<vmem>>, vector<8x32xf32>
    %c0_4 = arith.constant 0 : index
    %c0_5 = arith.constant 0 : index
    %5 = vector.load %arg5[%c0_4, %c0_5] : memref<8x32xf32, #tpu.memory_space<vmem>>, vector<8x32xf32>
    %c0_i32_6 = arith.constant 0 : i32
    %c8_i32 = arith.constant 8 : i32
    %6 = arith.muli %c0_i32_6, %c8_i32 : i32
    %7 = tpu.assume_multiple %6, 8 : i32
    %8 = arith.index_cast %7 : i32 to index
    %c0_7 = arith.constant 0 : index
    %9 = vector.load %arg1[%8, %c0_7] : memref<32x128xf32, #tpu.memory_space<vmem>>, vector<8x128xf32>
    %10 = arith.truncf %4 : vector<8x32xf32> to vector<8x32xbf16>
    %cst = arith.constant dense<0.000000e+00> : vector<8x128xf32>
    %11 = tpu.matmul %10, %3, %cst {dimension_numbers = #tpu.dot_dimension_numbers<[1], [0], [0], [1], [0, 0, 1, 1], [], []>} : vector<8x32xbf16>, vector<32x128xbf16>, vector<8x128xf32> -> vector<8x128xf32>
    %12 = arith.addf %9, %11 : vector<8x128xf32>
    %13 = vector.extract_strided_slice %12 {offsets = [0, 0], sizes = [8, 96], strides = [1, 1]} : vector<8x128xf32> to vector<8x96xf32>
    %cst_8 = arith.constant 5.000000e-01 : f32
    %14 = vector.broadcast %cst_8 : f32 to vector<8x96xf32>
    %15 = arith.mulf %14, %13 : vector<8x96xf32>
    %16 = math.tanh %15 : vector<8x96xf32>
    %cst_9 = arith.constant 5.000000e-01 : f32
    %17 = vector.broadcast %cst_9 : f32 to vector<8x96xf32>
    %18 = arith.mulf %17, %16 : vector<8x96xf32>
    %cst_10 = arith.constant 5.000000e-01 : f32
    %19 = vector.broadcast %cst_10 : f32 to vector<8x96xf32>
    %20 = arith.addf %18, %19 : vector<8x96xf32>
    %21 = vector.extract_strided_slice %20 {offsets = [0, 0], sizes = [8, 32], strides = [1, 1]} : vector<8x96xf32> to vector<8x32xf32>
    %22 = vector.extract_strided_slice %20 {offsets = [0, 32], sizes = [8, 32], strides = [1, 1]} : vector<8x96xf32> to vector<8x32xf32>
    %23 = vector.extract_strided_slice %20 {offsets = [0, 64], sizes = [8, 32], strides = [1, 1]} : vector<8x96xf32> to vector<8x32xf32>
    %24 = vector.extract_strided_slice %12 {offsets = [0, 96], sizes = [8, 32], strides = [1, 1]} : vector<8x128xf32> to vector<8x32xf32>
    %25 = math.tanh %24 : vector<8x32xf32>
    %26 = arith.mulf %22, %5 : vector<8x32xf32>
    %27 = arith.mulf %21, %25 : vector<8x32xf32>
    %28 = arith.addf %26, %27 : vector<8x32xf32>
    %29 = math.tanh %28 : vector<8x32xf32>
    %30 = arith.mulf %23, %29 : vector<8x32xf32>
    %c1_i32 = arith.constant 1 : i32
    %c8_i32_11 = arith.constant 8 : i32
    %31 = arith.muli %c1_i32, %c8_i32_11 : i32
    %32 = tpu.assume_multiple %31, 8 : i32
    %33 = arith.index_cast %32 : i32 to index
    %c0_12 = arith.constant 0 : index
    %34 = vector.load %arg1[%33, %c0_12] : memref<32x128xf32, #tpu.memory_space<vmem>>, vector<8x128xf32>
    %35 = arith.truncf %30 : vector<8x32xf32> to vector<8x32xbf16>
    %cst_13 = arith.constant dense<0.000000e+00> : vector<8x128xf32>
    %36 = tpu.matmul %35, %3, %cst_13 {dimension_numbers = #tpu.dot_dimension_numbers<[1], [0], [0], [1], [0, 0, 1, 1], [], []>} : vector<8x32xbf16>, vector<32x128xbf16>, vector<8x128xf32> -> vector<8x128xf32>
    %37 = arith.addf %34, %36 : vector<8x128xf32>
    %38 = vector.extract_strided_slice %37 {offsets = [0, 0], sizes = [8, 96], strides = [1, 1]} : vector<8x128xf32> to vector<8x96xf32>
    %cst_14 = arith.constant 5.000000e-01 : f32
    %39 = vector.broadcast %cst_14 : f32 to vector<8x96xf32>
    %40 = arith.mulf %39, %38 : vector<8x96xf32>
    %41 = math.tanh %40 : vector<8x96xf32>
    %cst_15 = arith.constant 5.000000e-01 : f32
    %42 = vector.broadcast %cst_15 : f32 to vector<8x96xf32>
    %43 = arith.mulf %42, %41 : vector<8x96xf32>
    %cst_16 = arith.constant 5.000000e-01 : f32
    %44 = vector.broadcast %cst_16 : f32 to vector<8x96xf32>
    %45 = arith.addf %43, %44 : vector<8x96xf32>
    %46 = vector.extract_strided_slice %45 {offsets = [0, 0], sizes = [8, 32], strides = [1, 1]} : vector<8x96xf32> to vector<8x32xf32>
    %47 = vector.extract_strided_slice %45 {offsets = [0, 32], sizes = [8, 32], strides = [1, 1]} : vector<8x96xf32> to vector<8x32xf32>
    %48 = vector.extract_strided_slice %45 {offsets = [0, 64], sizes = [8, 32], strides = [1, 1]} : vector<8x96xf32> to vector<8x32xf32>
    %49 = vector.extract_strided_slice %37 {offsets = [0, 96], sizes = [8, 32], strides = [1, 1]} : vector<8x128xf32> to vector<8x32xf32>
    %50 = math.tanh %49 : vector<8x32xf32>
    %51 = arith.mulf %47, %28 : vector<8x32xf32>
    %52 = arith.mulf %46, %50 : vector<8x32xf32>
    %53 = arith.addf %51, %52 : vector<8x32xf32>
    %54 = math.tanh %53 : vector<8x32xf32>
    %55 = arith.mulf %48, %54 : vector<8x32xf32>
    %c2_i32 = arith.constant 2 : i32
    %c8_i32_17 = arith.constant 8 : i32
    %56 = arith.muli %c2_i32, %c8_i32_17 : i32
    %57 = tpu.assume_multiple %56, 8 : i32
    %58 = arith.index_cast %57 : i32 to index
    %c0_18 = arith.constant 0 : index
    %59 = vector.load %arg1[%58, %c0_18] : memref<32x128xf32, #tpu.memory_space<vmem>>, vector<8x128xf32>
    %60 = arith.truncf %55 : vector<8x32xf32> to vector<8x32xbf16>
    %cst_19 = arith.constant dense<0.000000e+00> : vector<8x128xf32>
    %61 = tpu.matmul %60, %3, %cst_19 {dimension_numbers = #tpu.dot_dimension_numbers<[1], [0], [0], [1], [0, 0, 1, 1], [], []>} : vector<8x32xbf16>, vector<32x128xbf16>, vector<8x128xf32> -> vector<8x128xf32>
    %62 = arith.addf %59, %61 : vector<8x128xf32>
    %63 = vector.extract_strided_slice %62 {offsets = [0, 0], sizes = [8, 96], strides = [1, 1]} : vector<8x128xf32> to vector<8x96xf32>
    %cst_20 = arith.constant 5.000000e-01 : f32
    %64 = vector.broadcast %cst_20 : f32 to vector<8x96xf32>
    %65 = arith.mulf %64, %63 : vector<8x96xf32>
    %66 = math.tanh %65 : vector<8x96xf32>
    %cst_21 = arith.constant 5.000000e-01 : f32
    %67 = vector.broadcast %cst_21 : f32 to vector<8x96xf32>
    %68 = arith.mulf %67, %66 : vector<8x96xf32>
    %cst_22 = arith.constant 5.000000e-01 : f32
    %69 = vector.broadcast %cst_22 : f32 to vector<8x96xf32>
    %70 = arith.addf %68, %69 : vector<8x96xf32>
    %71 = vector.extract_strided_slice %70 {offsets = [0, 0], sizes = [8, 32], strides = [1, 1]} : vector<8x96xf32> to vector<8x32xf32>
    %72 = vector.extract_strided_slice %70 {offsets = [0, 32], sizes = [8, 32], strides = [1, 1]} : vector<8x96xf32> to vector<8x32xf32>
    %73 = vector.extract_strided_slice %70 {offsets = [0, 64], sizes = [8, 32], strides = [1, 1]} : vector<8x96xf32> to vector<8x32xf32>
    %74 = vector.extract_strided_slice %62 {offsets = [0, 96], sizes = [8, 32], strides = [1, 1]} : vector<8x128xf32> to vector<8x32xf32>
    %75 = math.tanh %74 : vector<8x32xf32>
    %76 = arith.mulf %72, %53 : vector<8x32xf32>
    %77 = arith.mulf %71, %75 : vector<8x32xf32>
    %78 = arith.addf %76, %77 : vector<8x32xf32>
    %79 = math.tanh %78 : vector<8x32xf32>
    %80 = arith.mulf %73, %79 : vector<8x32xf32>
    %c3_i32 = arith.constant 3 : i32
    %c8_i32_23 = arith.constant 8 : i32
    %81 = arith.muli %c3_i32, %c8_i32_23 : i32
    %82 = tpu.assume_multiple %81, 8 : i32
    %83 = arith.index_cast %82 : i32 to index
    %c0_24 = arith.constant 0 : index
    %84 = vector.load %arg1[%83, %c0_24] : memref<32x128xf32, #tpu.memory_space<vmem>>, vector<8x128xf32>
    %85 = arith.truncf %80 : vector<8x32xf32> to vector<8x32xbf16>
    %cst_25 = arith.constant dense<0.000000e+00> : vector<8x128xf32>
    %86 = tpu.matmul %85, %3, %cst_25 {dimension_numbers = #tpu.dot_dimension_numbers<[1], [0], [0], [1], [0, 0, 1, 1], [], []>} : vector<8x32xbf16>, vector<32x128xbf16>, vector<8x128xf32> -> vector<8x128xf32>
    %87 = arith.addf %84, %86 : vector<8x128xf32>
    %88 = vector.extract_strided_slice %87 {offsets = [0, 0], sizes = [8, 96], strides = [1, 1]} : vector<8x128xf32> to vector<8x96xf32>
    %cst_26 = arith.constant 5.000000e-01 : f32
    %89 = vector.broadcast %cst_26 : f32 to vector<8x96xf32>
    %90 = arith.mulf %89, %88 : vector<8x96xf32>
    %91 = math.tanh %90 : vector<8x96xf32>
    %cst_27 = arith.constant 5.000000e-01 : f32
    %92 = vector.broadcast %cst_27 : f32 to vector<8x96xf32>
    %93 = arith.mulf %92, %91 : vector<8x96xf32>
    %cst_28 = arith.constant 5.000000e-01 : f32
    %94 = vector.broadcast %cst_28 : f32 to vector<8x96xf32>
    %95 = arith.addf %93, %94 : vector<8x96xf32>
    %96 = vector.extract_strided_slice %95 {offsets = [0, 0], sizes = [8, 32], strides = [1, 1]} : vector<8x96xf32> to vector<8x32xf32>
    %97 = vector.extract_strided_slice %95 {offsets = [0, 32], sizes = [8, 32], strides = [1, 1]} : vector<8x96xf32> to vector<8x32xf32>
    %98 = vector.extract_strided_slice %95 {offsets = [0, 64], sizes = [8, 32], strides = [1, 1]} : vector<8x96xf32> to vector<8x32xf32>
    %99 = vector.extract_strided_slice %87 {offsets = [0, 96], sizes = [8, 32], strides = [1, 1]} : vector<8x128xf32> to vector<8x32xf32>
    %100 = math.tanh %99 : vector<8x32xf32>
    %101 = arith.mulf %97, %78 : vector<8x32xf32>
    %102 = arith.mulf %96, %100 : vector<8x32xf32>
    %103 = arith.addf %101, %102 : vector<8x32xf32>
    %104 = math.tanh %103 : vector<8x32xf32>
    %105 = arith.mulf %98, %104 : vector<8x32xf32>
    %c4_i32 = arith.constant 4 : i32
    %c0_29 = arith.constant 0 : index
    %c0_30 = arith.constant 0 : index
    %106 = vector.load %arg4[%c0_29, %c0_30] : memref<8x32xf32, #tpu.memory_space<vmem>>, vector<8x32xf32>
    tpu.vector_store %arg4[%c0_29, %c0_30], %105 {strides = array<i32>} : memref<8x32xf32, #tpu.memory_space<vmem>>, vector<8x32xf32>,
    %c0_31 = arith.constant 0 : index
    %c0_32 = arith.constant 0 : index
    %107 = vector.load %arg5[%c0_31, %c0_32] : memref<8x32xf32, #tpu.memory_space<vmem>>, vector<8x32xf32>
    tpu.vector_store %arg5[%c0_31, %c0_32], %103 {strides = array<i32>} : memref<8x32xf32, #tpu.memory_space<vmem>>, vector<8x32xf32>,
    %c1_i32_33 = arith.constant 1 : i32
    %108 = arith.cmpi eq, %arg0, %c1_i32_33 : i32
    %109 = arith.extui %108 : i1 to i32
    %c0_i32_34 = arith.constant 0 : i32
    %110 = arith.cmpi ne, %109, %c0_i32_34 : i32
    scf.if %110 {
      %c0_35 = arith.constant 0 : index
      %c0_36 = arith.constant 0 : index
      %111 = vector.load %arg3[%c0_35, %c0_36] : memref<8x32xf32, #tpu.memory_space<vmem>>, vector<8x32xf32>
      tpu.vector_store %arg3[%c0_35, %c0_36], %105 {strides = array<i32>} : memref<8x32xf32, #tpu.memory_space<vmem>>, vector<8x32xf32>,
    } else {
    }
    return
  }
  func.func @transform_0(%arg0: i32) -> (i32, i32) {
    %c0_i32 = arith.constant 0 : i32
    %c0_i32_0 = arith.constant 0 : i32
    return %arg0, %c0_i32 : i32, i32
  }
  func.func @transform_1(%arg0: i32) -> (i32, i32) {
    %c0_i32 = arith.constant 0 : i32
    %c0_i32_0 = arith.constant 0 : i32
    %c0_i32_1 = arith.constant 0 : i32
    return %c0_i32, %c0_i32_0 : i32, i32
  }
  func.func @transform_2(%arg0: i32) -> (i32, i32) {
    %c0_i32 = arith.constant 0 : i32
    %c0_i32_0 = arith.constant 0 : i32
    %c0_i32_1 = arith.constant 0 : i32
    return %c0_i32, %c0_i32_0 : i32, i32
  }
}

</mosaic_0001>

<llo_original>
// kernel: tpu_custom_call.1
$region0: #{tpu_custom_call.1}
  #allocation0 [shape = 'u32[]', space=smem, size = 0x4, offset = 0x4, fixed_abs, tag = 'smem constant byte address 0x4 - core index']
  #allocation1 [shape = 'u32[144,128]{1,0:T(1,128)}', space=vmem, size = 0x12000, scoped, tag = 'internal scratch']
  #allocation2 [shape = 'f32[8,32]{1,0:T(8,128)}', space=vmem, size = 0x1000, scoped, tag = 'scratch operand']
  #allocation3 [shape = 'f32[8,32]{1,0:T(8,128)}', space=vmem, size = 0x1000, scoped, tag = 'scratch operand']
  %s0 = inlined_call_operand.hbm [shape: f32[64,128], index: 0, kind: input, shape index: {}]
  %s1 = inlined_call_operand.hbm [shape: bf16[32,128], index: 1, kind: input, shape index: {}]
  %s2 = inlined_call_operand.hbm [shape: f32[8,32], index: 2, kind: output, shape index: {}]
  %s3 = sld [smem:[#allocation0]]
  $region57: #{tpu_custom_call.1} parent=0
    _
  %s5 = ssub.s32 1, %s3
  %s6 = scalar_select 0, %s5, %s3
  $region1: #{tpu_custom_call.1} parent=0
    #allocation4 [shape = 'u8[32768]{0}', space=vmem, size = 0x8000, scoped, tag = 'input window, operand 0']
    #allocation5 [shape = 's32[2]{0}', space=sflag, size = 0x8, scoped, tag = 'scoped memory for tpu_custom_call.1']
    #allocation6 [shape = 's32[2]{0}', space=sflag, size = 0x8, scoped, tag = 'scoped memory for tpu_custom_call.1']
    #allocation7 [shape = 'u8[8192]{0}', space=vmem, size = 0x2000, scoped, tag = 'input window, operand 1, single buffered']
    #allocation8 [shape = 's32[1]{0}', space=sflag, size = 0x4, scoped, tag = 'scoped memory for tpu_custom_call.1']
    #allocation9 [shape = 'u8[4096]{0}', space=vmem, size = 0x1000, scoped, tag = 'output window, operand 0, single buffered']
    %7 = vsyncpa [#allocation5], 0
    %s8 = scalar_lea.sflag [#allocation5], 1
    %9 = vsyncpa %s8, 0
    %10 = vsyncpa [#allocation8], 0
    %11 = vsyncpa [#allocation6], 0
    loop: start=0, step=1, limit=4
    $region2: #{tpu_custom_call.1} parent=1 // loop_pre_header
      _
    $region3: #{tpu_custom_call.1} parent=1 // loop_header
      %s13 = sphi 0, %s17
      %p14 = scmp.ge.s32.totalorder %s13, 4
      %s23 = sphi 0, %s25
      %s26 = sphi 0, %s23
      %s27 = sphi 0, %s26
      %s43 = sphi 0, %s27
      %s47 = sphi 0, %s47
      %s49 = sphi 0, %s47
      %s50 = sphi 0, %s49
      %s64 = sphi 0, %s50
      %s68 = sphi 0, %s68
      %s70 = sphi 0, %s68
      %s71 = sphi 0, %s70
      %s85 = sphi 0, %s71
    $region4: #{tpu_custom_call.1} parent=1 // loop_header_branch
      %16 = sbr.rel (%p14) target = $region8
    $region5: #{tpu_custom_call.1} parent=1 // loop_body
      %s18 = ssub.s32 %s13, 1
      %s19 = ssub.s32 %s13, 2
      %s20 = sadd.s32 %s13, 1
      %s21 = ssub.s32 %s13, %s20
      %p22 = scmp.eq.s32.totalorder %s21, 0
      %s24 = sadd.s32 %s23, 1
      %s25 = scalar_select %p22, %s23, %s24
      %p28 = pneg %p22
      %p29 = scmp.eq.s32.totalorder %s13, 1
      %p30 = por %p28, %p29
      %p31 = scmp.ne.s32.totalorder %s23, %s26
      %p32 = scmp.eq.s32.totalorder %s13, 0
      %p33 = por %p31, %p32
      %p34 = scmp.ne.s32.totalorder %s23, %s26
      %p35 = scmp.eq.s32.totalorder %s18, 1
      %p36 = por %p34, %p35
      %p37 = scmp.ne.s32.totalorder %s26, %s27
      %p38 = scmp.eq.s32.totalorder %s18, 0
      %p39 = por %p37, %p38
      %p40 = scmp.ne.s32.totalorder %s26, %s27
      %p41 = scmp.eq.s32.totalorder %s19, 1
      %p42 = por %p40, %p41
      %p44 = scmp.ne.s32.totalorder %s27, %s43
      %p45 = scmp.eq.s32.totalorder %s19, 0
      %p46 = por %p44, %p45
      %s48 = sadd.s32 %s47, 1
      %p51 = scmp.eq.s32.totalorder %s13, 1
      %p52 = scmp.ne.s32.totalorder %s47, %s49
      %p53 = scmp.eq.s32.totalorder %s13, 0
      %p54 = por %p52, %p53
      %p55 = scmp.ne.s32.totalorder %s47, %s49
      %p56 = scmp.eq.s32.totalorder %s18, 1
      %p57 = por %p55, %p56
      %p58 = scmp.ne.s32.totalorder %s49, %s50
      %p59 = scmp.eq.s32.totalorder %s18, 0
      %p60 = por %p58, %p59
      %p61 = scmp.ne.s32.totalorder %s49, %s50
      %p62 = scmp.eq.s32.totalorder %s19, 1
      %p63 = por %p61, %p62
      %p65 = scmp.ne.s32.totalorder %s50, %s64
      %p66 = scmp.eq.s32.totalorder %s19, 0
      %p67 = por %p65, %p66
      %s69 = sadd.s32 %s68, 1
      %p72 = scmp.eq.s32.totalorder %s13, 1
      %p73 = scmp.ne.s32.totalorder %s68, %s70
      %p74 = scmp.eq.s32.totalorder %s13, 0
      %p75 = por %p73, %p74
      %p76 = scmp.ne.s32.totalorder %s68, %s70
      %p77 = scmp.eq.s32.totalorder %s18, 1
      %p78 = por %p76, %p77
      %p79 = scmp.ne.s32.totalorder %s70, %s71
      %p80 = scmp.eq.s32.totalorder %s18, 0
      %p81 = por %p79, %p80
      %p82 = scmp.ne.s32.totalorder %s70, %s71
      %p83 = scmp.eq.s32.totalorder %s19, 1
      %p84 = por %p82, %p83
      %p86 = scmp.ne.s32.totalorder %s71, %s85
      %p87 = scmp.eq.s32.totalorder %s19, 0
      %p88 = por %p86, %p87
      %p89 = scmp.le.s32.totalorder 1, %s13
      %p90 = scmp.lt.s32.totalorder %s13, 3
      %p91 = pnand %p89, %p90
      %p92 = pneg %p91
      // Predicated region
      $region9: #{tpu_custom_call.1} parent=5 // pred_check
        _
      $region10: #{tpu_custom_call.1} parent=5 // pred_check_branch
        %94 = sbr.rel (%p91) target = $region12
      $region11: #{tpu_custom_call.1} parent=5 // pred_region
        %s95 = ssub.s32 %s13, 1
        // Predicated region
        $region13: #{tpu_custom_call.1} parent=11 // pred_check
          %p96 = pneg %p60
        $region14: #{tpu_custom_call.1} parent=11 // pred_check_branch
          %98 = sbr.rel (%p96) target = $region16
        $region15: #{tpu_custom_call.1} parent=11 // pred_region
          %s100 = ssub.s32 256, 256
          %101 = vsyncadd [#allocation8], %s100
          %s102 = sshll.u32 [#allocation7], 4
          %s103 = int_to_ptr.vmem [resolvable:$true] %s102
          %108 = dma.hbm_to_vmem [thread:$0]  %s1, 256, %s103, [#allocation8], 64, 64, 4
        $region16: #{tpu_custom_call.1} parent=11 // pred_fallthru
          _
      $region12: #{tpu_custom_call.1} parent=5 // pred_fallthru
        _
      %p109 = scmp.lt.s32.totalorder %s13, 2
      // Predicated region
      $region17: #{tpu_custom_call.1} parent=5 // pred_check
        %p110 = pneg %p109
      $region18: #{tpu_custom_call.1} parent=5 // pred_check_branch
        %112 = sbr.rel (%p110) target = $region20
      $region19: #{tpu_custom_call.1} parent=5 // pred_region
        // Predicated region
        $region21: #{tpu_custom_call.1} parent=19 // pred_check
          %p113 = pneg %p33
        $region22: #{tpu_custom_call.1} parent=19 // pred_check_branch
          %115 = sbr.rel (%p113) target = $region24
        $region23: #{tpu_custom_call.1} parent=19 // pred_region
          %s116 = sand.u32 %s23, 1
          %s117 = scalar_lea.sflag [#allocation5], %s116
          %s118 = sand.u32 %s23, 1
          %s119 = smul.addr %s118, 32
          %s120 = scalar_lea.vmem [#allocation4], %s119
          %s121 = smul.u32 4, %s13
          %s123 = ssub.s32 512, 512
          %124 = vsyncadd %s117, %s123
          %s125 = smul.addr %s121, 128
          %s126 = scalar_lea.hbm %s0, %s125
          %s127 = sshll.u32 %s120, 4
          %s128 = int_to_ptr.vmem [resolvable:$true] %s127
          %133 = dma.hbm_to_vmem [thread:$0]  %s126, 512, %s128, %s117, 128, 128, 8
        $region24: #{tpu_custom_call.1} parent=19 // pred_fallthru
          _
      $region20: #{tpu_custom_call.1} parent=5 // pred_fallthru
        _
      %p134 = scmp.le.s32.totalorder 1, %s13
      %p135 = scmp.lt.s32.totalorder %s13, 3
      %p136 = pnand %p134, %p135
      %p137 = pneg %p136
      // Predicated region
      $region25: #{tpu_custom_call.1} parent=5 // pred_check
        _
      $region26: #{tpu_custom_call.1} parent=5 // pred_check_branch
        %139 = sbr.rel (%p136) target = $region28
      $region27: #{tpu_custom_call.1} parent=5 // pred_region
        %s140 = ssub.s32 %s13, 1
        %s141 = sand.u32 %s26, 1
        %s142 = scalar_lea.sflag [#allocation5], %s141
        %s143 = sand.u32 %s26, 1
        %s144 = smul.addr %s143, 32
        %s145 = scalar_lea.vmem [#allocation4], %s144
        // Predicated region
        $region29: #{tpu_custom_call.1} parent=27 // pred_check
          %p146 = pneg %p39
        $region30: #{tpu_custom_call.1} parent=27 // pred_check_branch
          %148 = sbr.rel (%p146) target = $region32
        $region31: #{tpu_custom_call.1} parent=27 // pred_region
          %149 = dma.done %s142, 512
        $region32: #{tpu_custom_call.1} parent=27 // pred_fallthru
          _
        // Predicated region
        $region33: #{tpu_custom_call.1} parent=27 // pred_check
          %p150 = pneg %p60
        $region34: #{tpu_custom_call.1} parent=27 // pred_check_branch
          %152 = sbr.rel (%p150) target = $region36
        $region35: #{tpu_custom_call.1} parent=27 // pred_region
          %153 = dma.done [#allocation8], 256
        $region36: #{tpu_custom_call.1} parent=27 // pred_fallthru
          _
        %s154 = sand.u32 %s26, 1
        %s155 = scalar_lea.sflag [#allocation5], %s154
        %s156 = sand.u32 %s26, 1
        %s157 = smul.addr %s156, 32
        %s158 = scalar_lea.vmem [#allocation4], %s157
        %p159 = pneg %p39
        %p160 = pneg %p36
        %p161 = pneg %p60
        %p162 = pneg %p57
        %p163 = pneg %p81
        %p164 = pneg %p78
        %s165 = smul.u32 4, %s18
        %p167 = scmp.eq.s32.totalorder %s18, 0
        // Predicated region
        $region37: #{tpu_custom_call.1} parent=27 // pred_check
          %p168 = pneg %p167
        $region38: #{tpu_custom_call.1} parent=27 // pred_check_branch
          %170 = sbr.rel (%p168) target = $region40
        $region39: #{tpu_custom_call.1} parent=27 // pred_region
          %vm171 = vcmask 261120
          %172 = vst.msk [vmem:[#allocation2] sm:$0xff] %vm171, 0.0
          %173 = vst.msk [vmem:[#allocation3] sm:$0xff] %vm171, 0.0
        $region40: #{tpu_custom_call.1} parent=27 // pred_fallthru
          _
        %v174 = vld [vmem:[#allocation7] sm:$0xf]
        %v175 = vld [vmem:[#allocation7 + $0x4] sm:$0xf]
        %v176 = vld [vmem:[#allocation7 + $0x8] sm:$0xf]
        %v177 = vld [vmem:[#allocation7 + $0xc] sm:$0xf]
        %v178 = vld [vmem:[#allocation2] sm:$0xff]
        %v179 = vld [vmem:[#allocation3] sm:$0xff]
        %v180 = vld [vmem:[%s145] sm:$0xff]
        %v181 = vpack.c.bf16 %v178, %v178
        %v186 = vunpack.c.l.b16 %v174
        %v187 = vunpack.c.l.b16 %v175
        %v188 = vunpack.c.l.b16 %v176
        %v189 = vunpack.c.l.b16 %v177
        %v190 = vpack.c.b16 %v187, %v186
        %v191 = vpack.c.b16 %v189, %v188
        %vm194 = vcmask 261120
        %v196 = vsel %vm194, %v181, 0
        %198 = vmatprep.subr.bf16.mxu0 0
        %199 = vmatpush1.bf16.msra.mxu0 %v190
        %200 = vmatprep.subr.bf16.mxu0 0
        %201 = vmatpush1.bf16.msra.mxu0 %v191
        %202 = vmatprep.subr.bf16.mxu0 0
        %203 = vmatpush1.bf16.msra.mxu0 0
        %204 = vmatprep.subr.bf16.mxu0 0
        %205 = vmatpush1.bf16.msra.mxu0 0
        %206 = vmatprep.subr.bf16.mxu0 0
        %207 = vmatpush1.bf16.msra.mxu0 0
        %208 = vmatprep.subr.bf16.mxu0 0
        %209 = vmatpush1.bf16.msra.mxu0 0
        %210 = vmatprep.subr.bf16.mxu0 0
        %211 = vmatpush1.bf16.msra.mxu0 0
        %212 = vmatprep.subr.bf16.mxu0 0
        %213 = vmatpush1.bf16.msra.mxu0 0
        %214 = vmatprep.subr.bf16.mxu0 0
        %215 = vmatpush1.bf16.msra.mxu0 0
        %216 = vmatprep.subr.bf16.mxu0 0
        %217 = vmatpush1.bf16.msra.mxu0 0
        %218 = vmatprep.subr.bf16.mxu0 0
        %219 = vmatpush1.bf16.msra.mxu0 0
        %220 = vmatprep.subr.bf16.mxu0 0
        %221 = vmatpush1.bf16.msra.mxu0 0
        %222 = vmatprep.subr.bf16.mxu0 0
        %223 = vmatpush1.bf16.msra.mxu0 0
        %224 = vmatprep.subr.bf16.mxu0 0
        %225 = vmatpush1.bf16.msra.mxu0 0
        %226 = vmatprep.subr.bf16.mxu0 0
        %227 = vmatpush1.bf16.msra.mxu0 0
        %228 = vmatprep.subr.bf16.mxu0 0
        %229 = vmatpush1.bf16.msra.mxu0 0
        %230 = vmatprep.mubr.bf16.mxu0 0
        %231 = vmatmul.mubr.bf16.gmra.mrb[0].mxu0 %v196
        %v232 = vpop.f32.mrb[0].mxu0
        %v233 = vadd.f32 0.0, %v232
        %v234 = vpop.f32.mrb[0].mxu0
        %v235 = vpop.f32.mrb[0].mxu0
        %v236 = vpop.f32.mrb[0].mxu0
        %237 = vdwg.mxu0
        %v238 = vadd.f32 %v180, %v233
        %v239 = vmul.f32 %v238, 0.5
        %v240 = vtanh.pop %v239
        %v241 = vmul.f32 %v240, 0.5
        %v242 = vadd.f32 %v241, 0.5
        %v243 = vtanh.pop %v238
        %245 = vrot.lane.b32.xlu0 %v179, 32
        %v246 = vpop.permute.xlu0 %245
        %v248 = vmul.f32 %v242, %v246
        %250 = vrot.lane.b32.xlu0 %v243, 32
        %v251 = vpop.permute.xlu0 %250
        %v253 = vmul.f32 %v242, %v251
        %255 = vrot.lane.b32.xlu0 %v253, 32
        %v256 = vpop.permute.xlu0 %255
        %v258 = vadd.f32 %v248, %v256
        %v259 = vtanh.pop %v258
        %261 = vrot.lane.b32.xlu0 %v259, 32
        %v262 = vpop.permute.xlu0 %261
        %v264 = vmul.f32 %v242, %v262
        %s265 = scalar_lea.vmem %s145, 8 [#allocation4]
        %v266 = vld [vmem:[%s265] sm:$0xff]
        %v267 = vpack.c.bf16 %v264, %v264
        %269 = vrot.lane.b32.xlu0 %v267, 64
        %v270 = vpop.permute.xlu0 %269
        %v272 = vsel %vm194, %v270, 0
        %274 = vmatprep.subr.bf16.mxu0 0
        %275 = vmatpush1.bf16.msra.mxu0 %v190
        %276 = vmatprep.subr.bf16.mxu0 0
        %277 = vmatpush1.bf16.msra.mxu0 %v191
        %278 = vmatprep.subr.bf16.mxu0 0
        %279 = vmatpush1.bf16.msra.mxu0 0
        %280 = vmatprep.subr.bf16.mxu0 0
        %281 = vmatpush1.bf16.msra.mxu0 0
        %282 = vmatprep.subr.bf16.mxu0 0
        %283 = vmatpush1.bf16.msra.mxu0 0
        %284 = vmatprep.subr.bf16.mxu0 0
        %285 = vmatpush1.bf16.msra.mxu0 0
        %286 = vmatprep.subr.bf16.mxu0 0
        %287 = vmatpush1.bf16.msra.mxu0 0
        %288 = vmatprep.subr.bf16.mxu0 0
        %289 = vmatpush1.bf16.msra.mxu0 0
        %290 = vmatprep.subr.bf16.mxu0 0
        %291 = vmatpush1.bf16.msra.mxu0 0
        %292 = vmatprep.subr.bf16.mxu0 0
        %293 = vmatpush1.bf16.msra.mxu0 0
        %294 = vmatprep.subr.bf16.mxu0 0
        %295 = vmatpush1.bf16.msra.mxu0 0
        %296 = vmatprep.subr.bf16.mxu0 0
        %297 = vmatpush1.bf16.msra.mxu0 0
        %298 = vmatprep.subr.bf16.mxu0 0
        %299 = vmatpush1.bf16.msra.mxu0 0
        %300 = vmatprep.subr.bf16.mxu0 0
        %301 = vmatpush1.bf16.msra.mxu0 0
        %302 = vmatprep.subr.bf16.mxu0 0
        %303 = vmatpush1.bf16.msra.mxu0 0
        %304 = vmatprep.subr.bf16.mxu0 0
        %305 = vmatpush1.bf16.msra.mxu0 0
        %306 = vmatprep.mubr.bf16.mxu0 0
        %307 = vmatmul.mubr.bf16.gmra.mrb[0].mxu0 %v272
        %v308 = vpop.f32.mrb[0].mxu0
        %v309 = vadd.f32 0.0, %v308
        %v310 = vpop.f32.mrb[0].mxu0
        %v311 = vpop.f32.mrb[0].mxu0
        %v312 = vpop.f32.mrb[0].mxu0
        %313 = vdwg.mxu0
        %v314 = vadd.f32 %v266, %v309
        %v315 = vmul.f32 %v314, 0.5
        %v316 = vtanh.pop %v315
        %v317 = vmul.f32 %v316, 0.5
        %v318 = vadd.f32 %v317, 0.5
        %v319 = vtanh.pop %v314
        %v320 = vmul.f32 %v318, %v258
        %322 = vrot.lane.b32.xlu0 %v319, 32
        %v323 = vpop.permute.xlu0 %322
        %v325 = vmul.f32 %v318, %v323
        %327 = vrot.lane.b32.xlu0 %v325, 32
        %v328 = vpop.permute.xlu0 %327
        %v330 = vadd.f32 %v320, %v328
        %v331 = vtanh.pop %v330
        %333 = vrot.lane.b32.xlu0 %v331, 32
        %v334 = vpop.permute.xlu0 %333
        %v336 = vmul.f32 %v318, %v334
        %s337 = scalar_lea.vmem %s145, 16 [#allocation4]
        %v338 = vld [vmem:[%s337] sm:$0xff]
        %v339 = vpack.c.bf16 %v336, %v336
        %341 = vrot.lane.b32.xlu0 %v339, 64
        %v342 = vpop.permute.xlu0 %341
        %v344 = vsel %vm194, %v342, 0
        %346 = vmatprep.subr.bf16.mxu0 0
        %347 = vmatpush1.bf16.msra.mxu0 %v190
        %348 = vmatprep.subr.bf16.mxu0 0
        %349 = vmatpush1.bf16.msra.mxu0 %v191
        %350 = vmatprep.subr.bf16.mxu0 0
        %351 = vmatpush1.bf16.msra.mxu0 0
        %352 = vmatprep.subr.bf16.mxu0 0
        %353 = vmatpush1.bf16.msra.mxu0 0
        %354 = vmatprep.subr.bf16.mxu0 0
        %355 = vmatpush1.bf16.msra.mxu0 0
        %356 = vmatprep.subr.bf16.mxu0 0
        %357 = vmatpush1.bf16.msra.mxu0 0
        %358 = vmatprep.subr.bf16.mxu0 0
        %359 = vmatpush1.bf16.msra.mxu0 0
        %360 = vmatprep.subr.bf16.mxu0 0
        %361 = vmatpush1.bf16.msra.mxu0 0
        %362 = vmatprep.subr.bf16.mxu0 0
        %363 = vmatpush1.bf16.msra.mxu0 0
        %364 = vmatprep.subr.bf16.mxu0 0
        %365 = vmatpush1.bf16.msra.mxu0 0
        %366 = vmatprep.subr.bf16.mxu0 0
        %367 = vmatpush1.bf16.msra.mxu0 0
        %368 = vmatprep.subr.bf16.mxu0 0
        %369 = vmatpush1.bf16.msra.mxu0 0
        %370 = vmatprep.subr.bf16.mxu0 0
        %371 = vmatpush1.bf16.msra.mxu0 0
        %372 = vmatprep.subr.bf16.mxu0 0
        %373 = vmatpush1.bf16.msra.mxu0 0
        %374 = vmatprep.subr.bf16.mxu0 0
        %375 = vmatpush1.bf16.msra.mxu0 0
        %376 = vmatprep.subr.bf16.mxu0 0
        %377 = vmatpush1.bf16.msra.mxu0 0
        %378 = vmatprep.mubr.bf16.mxu0 0
        %379 = vmatmul.mubr.bf16.gmra.mrb[0].mxu0 %v344
        %v380 = vpop.f32.mrb[0].mxu0
        %v381 = vadd.f32 0.0, %v380
        %v382 = vpop.f32.mrb[0].mxu0
        %v383 = vpop.f32.mrb[0].mxu0
        %v384 = vpop.f32.mrb[0].mxu0
        %385 = vdwg.mxu0
        %v386 = vadd.f32 %v338, %v381
        %v387 = vmul.f32 %v386, 0.5
        %v388 = vtanh.pop %v387
        %v389 = vmul.f32 %v388, 0.5
        %v390 = vadd.f32 %v389, 0.5
        %v391 = vtanh.pop %v386
        %v392 = vmul.f32 %v390, %v330
        %394 = vrot.lane.b32.xlu0 %v391, 32
        %v395 = vpop.permute.xlu0 %394
        %v397 = vmul.f32 %v390, %v395
        %399 = vrot.lane.b32.xlu0 %v397, 32
        %v400 = vpop.permute.xlu0 %399
        %v402 = vadd.f32 %v392, %v400
        %v403 = vtanh.pop %v402
        %405 = vrot.lane.b32.xlu0 %v403, 32
        %v406 = vpop.permute.xlu0 %405
        %v408 = vmul.f32 %v390, %v406
        %s409 = scalar_lea.vmem %s145, 24 [#allocation4]
        %v410 = vld [vmem:[%s409] sm:$0xff]
        %v411 = vpack.c.bf16 %v408, %v408
        %413 = vrot.lane.b32.xlu0 %v411, 64
        %v414 = vpop.permute.xlu0 %413
        %v416 = vsel %vm194, %v414, 0
        %418 = vmatprep.subr.bf16.mxu0 0
        %419 = vmatpush1.bf16.msra.mxu0 %v190
        %420 = vmatprep.subr.bf16.mxu0 0
        %421 = vmatpush1.bf16.msra.mxu0 %v191
        %422 = vmatprep.subr.bf16.mxu0 0
        %423 = vmatpush1.bf16.msra.mxu0 0
        %424 = vmatprep.subr.bf16.mxu0 0
        %425 = vmatpush1.bf16.msra.mxu0 0
        %426 = vmatprep.subr.bf16.mxu0 0
        %427 = vmatpush1.bf16.msra.mxu0 0
        %428 = vmatprep.subr.bf16.mxu0 0
        %429 = vmatpush1.bf16.msra.mxu0 0
        %430 = vmatprep.subr.bf16.mxu0 0
        %431 = vmatpush1.bf16.msra.mxu0 0
        %432 = vmatprep.subr.bf16.mxu0 0
        %433 = vmatpush1.bf16.msra.mxu0 0
        %434 = vmatprep.subr.bf16.mxu0 0
        %435 = vmatpush1.bf16.msra.mxu0 0
        %436 = vmatprep.subr.bf16.mxu0 0
        %437 = vmatpush1.bf16.msra.mxu0 0
        %438 = vmatprep.subr.bf16.mxu0 0
        %439 = vmatpush1.bf16.msra.mxu0 0
        %440 = vmatprep.subr.bf16.mxu0 0
        %441 = vmatpush1.bf16.msra.mxu0 0
        %442 = vmatprep.subr.bf16.mxu0 0
        %443 = vmatpush1.bf16.msra.mxu0 0
        %444 = vmatprep.subr.bf16.mxu0 0
        %445 = vmatpush1.bf16.msra.mxu0 0
        %446 = vmatprep.subr.bf16.mxu0 0
        %447 = vmatpush1.bf16.msra.mxu0 0
        %448 = vmatprep.subr.bf16.mxu0 0
        %449 = vmatpush1.bf16.msra.mxu0 0
        %450 = vmatprep.mubr.bf16.mxu0 0
        %451 = vmatmul.mubr.bf16.gmra.mrb[0].mxu0 %v416
        %v452 = vpop.f32.mrb[0].mxu0
        %v453 = vadd.f32 0.0, %v452
        %v454 = vpop.f32.mrb[0].mxu0
        %v455 = vpop.f32.mrb[0].mxu0
        %v456 = vpop.f32.mrb[0].mxu0
        %457 = vdwg.mxu0
        %v458 = vadd.f32 %v410, %v453
        %v459 = vmul.f32 %v458, 0.5
        %v460 = vtanh.pop %v459
        %v461 = vmul.f32 %v460, 0.5
        %v462 = vadd.f32 %v461, 0.5
        %v463 = vtanh.pop %v458
        %v464 = vmul.f32 %v462, %v402
        %466 = vrot.lane.b32.xlu0 %v463, 32
        %v467 = vpop.permute.xlu0 %466
        %v469 = vmul.f32 %v462, %v467
        %471 = vrot.lane.b32.xlu0 %v469, 32
        %v472 = vpop.permute.xlu0 %471
        %v474 = vadd.f32 %v464, %v472
        %v475 = vtanh.pop %v474
        %477 = vrot.lane.b32.xlu0 %v475, 32
        %v478 = vpop.permute.xlu0 %477
        %v480 = vmul.f32 %v462, %v478
        %482 = vrot.lane.b32.xlu0 %v480, 64
        %v483 = vpop.permute.xlu0 %482
        %485 = vst.msk [vmem:[#allocation2] sm:$0xff] %vm194, %v483
        %487 = vrot.lane.b32.xlu0 %v474, 96
        %v488 = vpop.permute.xlu0 %487
        %490 = vst.msk [vmem:[#allocation3] sm:$0xff] %vm194, %v488
        %p491 = scmp.eq.s32.totalorder %s18, 1
        // Predicated region
        $region41: #{tpu_custom_call.1} parent=27 // pred_check
          %p492 = pneg %p491
        $region42: #{tpu_custom_call.1} parent=27 // pred_check_branch
          %494 = sbr.rel (%p492) target = $region44
        $region43: #{tpu_custom_call.1} parent=27 // pred_region
          %495 = vst.msk [vmem:[#allocation9] sm:$0xff] %vm194, %v483
        $region44: #{tpu_custom_call.1} parent=27 // pred_fallthru
          _
        // Predicated region
        $region45: #{tpu_custom_call.1} parent=27 // pred_check
          %p496 = pneg %p78
        $region46: #{tpu_custom_call.1} parent=27 // pred_check_branch
          %498 = sbr.rel (%p496) target = $region48
        $region47: #{tpu_custom_call.1} parent=27 // pred_region
          %s500 = ssub.s32 128, 128
          %501 = vsyncadd [#allocation6], %s500
          %s503 = sshll.u32 [#allocation9], 4
          %s504 = int_to_ptr.vmem [resolvable:$true] %s503
          %506 = dma.vmem_to_hbm [thread:$0]  %s504, 128, %s2, [#allocation6]
        $region48: #{tpu_custom_call.1} parent=27 // pred_fallthru
          _
        // Predicated region
        $region49: #{tpu_custom_call.1} parent=27 // pred_check
          %p507 = pneg %p78
        $region50: #{tpu_custom_call.1} parent=27 // pred_check_branch
          %509 = sbr.rel (%p507) target = $region52
        $region51: #{tpu_custom_call.1} parent=27 // pred_region
          %510 = dma.done [#allocation6], 128
        $region52: #{tpu_custom_call.1} parent=27 // pred_fallthru
          _
      $region28: #{tpu_custom_call.1} parent=5 // pred_fallthru
        _
      %p511 = scmp.le.s32.totalorder 2, %s13
      // Predicated region
      $region53: #{tpu_custom_call.1} parent=5 // pred_check
        %p512 = pneg %p511
      $region54: #{tpu_custom_call.1} parent=5 // pred_check_branch
        %514 = sbr.rel (%p512) target = $region56
      $region55: #{tpu_custom_call.1} parent=5 // pred_region
        %s515 = ssub.s32 %s13, 2
      $region56: #{tpu_custom_call.1} parent=5 // pred_fallthru
        _
    $region6: #{tpu_custom_call.1} parent=1 // loop_footer
      %s17 = sadd.s32 1, %s13
    $region7: #{tpu_custom_call.1} parent=1 // loop_footer_branch
      %12 = sbr.rel target = $region3
    $region8: #{tpu_custom_call.1} parent=1 // loop_exit
      _
    %516 = vsyncpa [#allocation5], 1
    %s517 = scalar_lea.sflag [#allocation5], 1
    %518 = vsyncpa %s517, 1
    %519 = vsyncpa [#allocation8], 1
    %520 = vsyncpa [#allocation6], 1
    %s521 = scalar_lea.sflag [#allocation6], 1
    %522 = vsyncpa %s521, 1

</llo_original>
